<compile_context>
chip_gen: v7x
topology: tpu7x:2x2x1
jax: 0.10.0
libtpu: 0.0.40
codegen_flags: <defaults>
</compile_context>

<pallas_src>
import jax
import jax.numpy as jnp
from jax.experimental import pallas as pl
from jax.experimental.pallas import tpu as pltpu

NUM_CLASSES = 7
GAMMA = 2.0            # fixed at 2 -> explicit square in the kernel
_LANES = 128
_TILE_CAP = 32 * 1024  # samples per grid step (lane-aligned), VMEM-safe on all gens


def _round_up(x, m):
    return (x + m - 1) // m * m


def _focal_loss_kernel(n_ref, logits_ref, labels_ref, out_ref):
    """One grid step over T samples; classes on sublanes, samples on lanes.

    n_ref:      SMEM (1,) int32      -- true sample count (masks padded lanes)
    logits_ref: VMEM (C, T) block    -- input dtype, cast to f32 here
    labels_ref: VMEM (1, T) int32 block
    out_ref:    VMEM (1, 128) f32    -- this tile's partial loss sum,
                broadcast across 128 lanes (unmasked lane-dense store)
    """
    x = logits_ref[...].astype(jnp.float32)                     # (C, T)
    c, t = x.shape

    # stable log-sum-exp along the class (sublane) axis
    m = jnp.max(x, axis=0, keepdims=True)                       # (1, T)
    s = jnp.sum(jnp.exp(x - m), axis=0, keepdims=True)          # (1, T)  EUP
    lse = m + jnp.log(s)                                        # (1, T)  EUP

    # true-class logit via sublane-iota compare (labels assumed in [0, C))
    cls = jax.lax.broadcasted_iota(jnp.int32, (c, t), 0)        # (C, T)
    x_y = jnp.sum(jnp.where(cls == labels_ref[...], x, 0.0),
                  axis=0, keepdims=True)                        # (1, T)

    logp_y = x_y - lse                                          # log p_true
    p_y = jnp.exp(logp_y)                                       # (1, T)  EUP
    q = 1.0 - p_y
    loss = -(q * q) * logp_y                                    # gamma = 2

    # Mask lanes past the true N (covers the partial last tile, including any
    # garbage in the un-DMA'd tail of the block), then reduce to one partial
    # sum for this tile.
    base = pl.program_id(0) * t
    idx = base + jax.lax.broadcasted_iota(jnp.int32, (1, t), 1)
    loss = jnp.where(idx < n_ref[0], loss, 0.0)
    out_ref[...] = jnp.full((1, _LANES), jnp.sum(loss), dtype=jnp.float32)


def _choose_tile(n):
    # Lane-aligned tile.  >= 2 grid steps whenever possible so
    # dimension_semantics=("parallel",) can shard across v7x's 2 TensorCores;
    # capped at 32K samples so double-buffered blocks + Mosaic temporaries fit
    # every generation's scoped-VMEM budget (tightest: v5e / v7x).
    if n <= 2 * _LANES:
        return _round_up(max(n, 1), _LANES)
    return min(_TILE_CAP, _round_up(pl.cdiv(n, 2), _LANES))


@jax.jit
def focal_loss_cn(logits_cn, labels):
    """Focal loss (gamma=2), kernel-native layout.

    logits_cn: (C, N) float (classes leading — no re-layout needed),
    labels:    (N,) int in [0, C).  Returns scalar f32 mean loss.
    """
    c, n = logits_cn.shape
    assert c == NUM_CLASSES
    tile_n = _choose_tile(n)
    grid = pl.cdiv(n, tile_n)

    labels2 = labels.astype(jnp.int32).reshape(1, n)   # lane-dense, free reshape
    n_true = jnp.array([n], dtype=jnp.int32)           # scalar-prefetch operand

    partials = pl.pallas_call(
        _focal_loss_kernel,
        out_shape=jax.ShapeDtypeStruct((1, grid * _LANES), jnp.float32),
        grid_spec=pltpu.PrefetchScalarGridSpec(
            num_scalar_prefetch=1,
            grid=(grid,),
            in_specs=[
                pl.BlockSpec((NUM_CLASSES, tile_n), lambda i, n_ref: (0, i)),
                pl.BlockSpec((1, tile_n), lambda i, n_ref: (0, i)),
            ],
            out_specs=pl.BlockSpec((1, _LANES), lambda i, n_ref: (0, i)),
        ),
        compiler_params=pltpu.CompilerParams(
            dimension_semantics=("parallel",),
            vmem_limit_bytes=32 * 1024 * 1024,
        ),
    )(n_true, logits_cn, labels2)

    per_tile = partials.reshape(grid, _LANES)[:, 0]     # one value per tile
    return jnp.sum(per_tile) / jnp.float32(n)


@jax.jit
def focal_loss(logits, labels):
    """PyTorch-style interface: logits (N, C) float, labels (N,) int in [0, C).

    The transpose below is exactly one fused XLA pass over the logits; code
    that can produce a (C, N) logits slab (e.g. a matmul epilogue) should call
    focal_loss_cn directly and skip it entirely (perf-review option (a)).
    """
    return focal_loss_cn(jnp.transpose(logits), labels)


def _reference(logits, labels):
    p = jax.nn.softmax(logits, axis=-1)
    oh = jax.nn.one_hot(labels, NUM_CLASSES, dtype=jnp.float32)
    return jnp.mean(jnp.sum(-oh * (1.0 - p) ** GAMMA * jnp.log(p), axis=1))


if __name__ == "__main__":
    key = jax.random.PRNGKey(0)
    k1, k2, k3, k4 = jax.random.split(key, 4)

    # primary check: small shapes matching the module interface (batch=8)
    logits = jax.random.normal(k1, (8, NUM_CLASSES), dtype=jnp.float32)
    labels = jax.random.randint(k2, (8,), 0, NUM_CLASSES, dtype=jnp.int32)
    loss = focal_loss(logits, labels)
    jax.block_until_ready(loss)
    ref = _reference(logits, labels)
    assert jnp.allclose(loss, ref, rtol=2e-5, atol=1e-5), (loss, ref)

    # secondary check: multi-tile grid with a partial, masked last block
    logits2 = jax.random.normal(k3, (300, NUM_CLASSES), dtype=jnp.float32)
    labels2 = jax.random.randint(k4, (300,), 0, NUM_CLASSES, dtype=jnp.int32)
    loss2 = focal_loss(logits2, labels2)
    jax.block_until_ready(loss2)
    ref2 = _reference(logits2, labels2)
    assert jnp.allclose(loss2, ref2, rtol=2e-5, atol=1e-5), (loss2, ref2)

    print("KERNEL_OK")
</pallas_src>

<mosaic_0001>
module attributes {stable_mosaic.version = 11 : i64} {
  func.func @_focal_loss_kernel(%arg0: i32, %arg1: memref<1xi32, #tpu.memory_space<smem>>, %arg2: memref<7x128xf32, #tpu.memory_space<vmem>>, %arg3: memref<1x128xi32, #tpu.memory_space<vmem>>, %arg4: memref<1x128xf32, #tpu.memory_space<vmem>>) attributes {dimension_semantics = [#tpu.dimension_semantics<parallel>], iteration_bounds = array<i64: 1>, scalar_prefetch = 1 : i64, scratch_operands = 0 : i64, tpu.core_type = #tpu.core_type<tc>, window_params = [{transform_indices = @transform_0, window_bounds = array<i64: 7, 128>}, {transform_indices = @transform_1, window_bounds = array<i64: 1, 128>}, {transform_indices = @transform_2, window_bounds = array<i64: 1, 128>}]} {
    %c0 = arith.constant 0 : index
    %c0_0 = arith.constant 0 : index
    %0 = vector.load %arg2[%c0, %c0_0] : memref<7x128xf32, #tpu.memory_space<vmem>>, vector<7x128xf32>
    %cst = arith.constant dense<0xFF800000> : vector<128xf32>
    %1 = vector.multi_reduction <maximumf>, %0, %cst [0] : vector<7x128xf32> to vector<128xf32>
    %2 = vector.shape_cast %1 : vector<128xf32> to vector<1x128xf32>
    %3 = vector.broadcast %2 : vector<1x128xf32> to vector<7x128xf32>
    %4 = arith.subf %0, %3 : vector<7x128xf32>
    %5 = math.exp %4 : vector<7x128xf32>
    %cst_1 = arith.constant dense<0.000000e+00> : vector<128xf32>
    %6 = vector.multi_reduction <add>, %5, %cst_1 [0] : vector<7x128xf32> to vector<128xf32>
    %7 = vector.shape_cast %6 : vector<128xf32> to vector<1x128xf32>
    %8 = math.log %7 : vector<1x128xf32>
    %9 = arith.addf %2, %8 : vector<1x128xf32>
    %10 = tpu.iota {dimensions = array<i32: 0>} : vector<7x128xi32>
    %c0_2 = arith.constant 0 : index
    %c0_3 = arith.constant 0 : index
    %11 = vector.load %arg3[%c0_2, %c0_3] : memref<1x128xi32, #tpu.memory_space<vmem>>, vector<1x128xi32>
    %12 = vector.broadcast %11 : vector<1x128xi32> to vector<7x128xi32>
    %13 = arith.cmpi eq, %10, %12 : vector<7x128xi32>
    %cst_4 = arith.constant 0.000000e+00 : f32
    %14 = vector.broadcast %cst_4 : f32 to vector<7x128xf32>
    %15 = arith.select %13, %0, %14 : vector<7x128xi1>, vector<7x128xf32>
    %cst_5 = arith.constant dense<0.000000e+00> : vector<128xf32>
    %16 = vector.multi_reduction <add>, %15, %cst_5 [0] : vector<7x128xf32> to vector<128xf32>
    %17 = vector.shape_cast %16 : vector<128xf32> to vector<1x128xf32>
    %18 = arith.subf %17, %9 : vector<1x128xf32>
    %19 = math.exp %18 : vector<1x128xf32>
    %cst_6 = arith.constant 1.000000e+00 : f32
    %20 = vector.broadcast %cst_6 : f32 to vector<1x128xf32>
    %21 = arith.subf %20, %19 : vector<1x128xf32>
    %22 = arith.mulf %21, %21 : vector<1x128xf32>
    %cst_7 = arith.constant 0.000000e+00 : f32
    %23 = vector.broadcast %cst_7 : f32 to vector<1x128xf32>
    %24 = arith.subf %23, %22 : vector<1x128xf32>
    %25 = arith.mulf %24, %18 : vector<1x128xf32>
    %c128_i32 = arith.constant 128 : i32
    %26 = arith.muli %arg0, %c128_i32 : i32
    %27 = tpu.iota {dimensions = array<i32: 1>} : vector<1x128xi32>
    %28 = vector.broadcast %26 : i32 to vector<1x128xi32>
    %29 = arith.addi %28, %27 : vector<1x128xi32>
    %c0_8 = arith.constant 0 : index
    %30 = memref.load %arg1[%c0_8] : memref<1xi32, #tpu.memory_space<smem>>
    %31 = vector.broadcast %30 : i32 to vector<1x128xi32>
    %32 = arith.cmpi slt, %29, %31 : vector<1x128xi32>
    %cst_9 = arith.constant 0.000000e+00 : f32
    %33 = vector.broadcast %cst_9 : f32 to vector<1x128xf32>
    %34 = arith.select %32, %25, %33 : vector<1x128xi1>, vector<1x128xf32>
    %35 = vector.shape_cast %34 : vector<1x128xf32> to vector<1x1x128xf32>
    %cst_10 = arith.constant dense<0.000000e+00> : vector<1xf32>
    %36 = vector.multi_reduction <add>, %35, %cst_10 [1, 2] : vector<1x1x128xf32> to vector<1xf32>
    %37 = vector.shape_cast %36 : vector<1xf32> to vector<1x1x1xf32>
    %38 = vector.extract %37[0, 0, 0] : f32 from vector<1x1x1xf32>
    %39 = vector.broadcast %38 : f32 to vector<1x128xf32>
    %c0_11 = arith.constant 0 : index
    %c0_12 = arith.constant 0 : index
    %40 = vector.load %arg4[%c0_11, %c0_12] : memref<1x128xf32, #tpu.memory_space<vmem>>, vector<1x128xf32>
    tpu.vector_store %arg4[%c0_11, %c0_12], %39 {strides = array<i32>} : memref<1x128xf32, #tpu.memory_space<vmem>>, vector<1x128xf32>,
    return
  }
  func.func @transform_0(%arg0: i32, %arg1: memref<1xi32, #tpu.memory_space<smem>>) -> (i32, i32) {
    %c0_i32 = arith.constant 0 : i32
    %c0_i32_0 = arith.constant 0 : i32
    return %c0_i32, %arg0 : i32, i32
  }
  func.func @transform_1(%arg0: i32, %arg1: memref<1xi32, #tpu.memory_space<smem>>) -> (i32, i32) {
    %c0_i32 = arith.constant 0 : i32
    %c0_i32_0 = arith.constant 0 : i32
    return %c0_i32, %arg0 : i32, i32
  }
  func.func @transform_2(%arg0: i32, %arg1: memref<1xi32, #tpu.memory_space<smem>>) -> (i32, i32) {
    %c0_i32 = arith.constant 0 : i32
    %c0_i32_0 = arith.constant 0 : i32
    return %c0_i32, %arg0 : i32, i32
  }
}

</mosaic_0001>

<llo_original>
// kernel: focal_loss_cn.1
$region0: #{focal_loss_cn.1}
  #allocation0 [shape = 'u32[]', space=smem, size = 0x4, offset = 0x4, fixed_abs, tag = 'smem constant byte address 0x4 - core index']
  #allocation1 [shape = 'u32[144,128]{1,0:T(1,128)}', space=vmem, size = 0x12000, scoped, tag = 'internal scratch']
  #allocation2 [shape = 's32[1]{0}', space=sflag, size = 0x4, scoped, tag = 'scoped memory for focal_loss_cn.1']
  #allocation3 [shape = 's32[1]{0:T(128)S(6)}', space=smem, size = 0x200, scoped, tag = 'prefetched SMEM operand 0']
  %s0 = inlined_call_operand.<no memory space> [shape: s32[1], index: 0, kind: input, shape index: {}]
  %s1 = inlined_call_operand.hbm [shape: f32[7,8], index: 1, kind: input, shape index: {}]
  %s2 = inlined_call_operand.vmem [shape: s32[1,8], index: 2, kind: input, shape index: {}]
  %s3 = inlined_call_operand.vmem [shape: f32[1,128], index: 3, kind: output, shape index: {}]
  %s4 = sld [smem:[#allocation0]]
  $region22: #{focal_loss_cn.1} parent=0
    _
  %s6 = ssub.s32 1, %s4
  %s7 = scalar_select 0, %s6, %s4
  %8 = sst [smem:[#allocation3]] %s0
  $region1: #{focal_loss_cn.1} parent=0
    #allocation4 [shape = 'u8[4096]{0}', space=vmem, size = 0x1000, scoped, tag = 'input window, operand 1, single buffered']
    #allocation5 [shape = 's32[1]{0}', space=sflag, size = 0x4, scoped, tag = 'scoped memory for focal_loss_cn.1']
    %9 = vsyncpa [#allocation5], 0
    // Predicated region
    $region2: #{focal_loss_cn.1} parent=1 // pred_check
      _
    $region3: #{focal_loss_cn.1} parent=1 // pred_check_branch
      %11 = sbr.rel (0) target = $region5
    $region4: #{focal_loss_cn.1} parent=1 // pred_region
      %s13 = ssub.s32 128, 128
      %14 = vsyncadd [#allocation5], %s13
      %s16 = sshll.u32 [#allocation4], 4
      %s17 = int_to_ptr.vmem [resolvable:$true] %s16
      %19 = dma.hbm_to_vmem [thread:$0]  %s1, 128, %s17, [#allocation5]
    $region5: #{focal_loss_cn.1} parent=1 // pred_fallthru
      _
    // Predicated region
    $region6: #{focal_loss_cn.1} parent=1 // pred_check
      _
    $region7: #{focal_loss_cn.1} parent=1 // pred_check_branch
      %21 = sbr.rel (0) target = $region9
    $region8: #{focal_loss_cn.1} parent=1 // pred_region
      _
    $region9: #{focal_loss_cn.1} parent=1 // pred_fallthru
      _
    // Predicated region
    $region10: #{focal_loss_cn.1} parent=1 // pred_check
      _
    $region11: #{focal_loss_cn.1} parent=1 // pred_check_branch
      %23 = sbr.rel (0) target = $region13
    $region12: #{focal_loss_cn.1} parent=1 // pred_region
      %24 = dma.done [#allocation5], 128
    $region13: #{focal_loss_cn.1} parent=1 // pred_fallthru
      _
    %v25 = vld [vmem:[#allocation4] sm:$0x7f]
    %vm26 = vcmask 1046528
    %v27 = vsel %vm26, %v25, -inf
    %v28 = vrot.slane %v27, 4
    %v29 = vmax.f32 %v27, %v28
    %v30 = vrot.slane %v29, 2
    %v31 = vmax.f32 %v29, %v30
    %v32 = vrot.slane %v31, 1
    %v33 = vmax.f32 %v31, %v32
    %v34 = vsub.f32 %v25, %v33
    %v35 = vmul.f32 %v34, 1.442695
    %v36 = vpow.pop %v35
    %v37 = vsel %vm26, %v36, 0.0
    %v38 = vrot.slane %v37, 4
    %v39 = vadd.f32 %v37, %v38
    %v40 = vrot.slane %v39, 2
    %v41 = vadd.f32 %v39, %v40
    %v42 = vrot.slane %v41, 1
    %v43 = vadd.f32 %v41, %v42
    %v44 = vlog2.pop %v43
    %v45 = vmul.f32 %v44, 0.6931472
    %v46 = vadd.f32 %v33, %v45
    %v47 = vlaneseq
    %v48 = vshrl.u32 %v47, 7
    %v49 = vld [vmem:[%s2] sm:$0x1]
    %v50 = vlaneseq
    %v51 = vshrl.u32 %v50, 7
    %v52 = vsub.s32 0, %v51
    %v53 = vrot.slane %v49, %v52
    %vm54 = vcmp.eq.s32.totalorder %v48, %v53
    %v55 = vsel %vm54, %v25, 0.0
    %v56 = vsel %vm26, %v55, 0.0
    %v57 = vrot.slane %v56, 4
    %v58 = vadd.f32 %v56, %v57
    %v59 = vrot.slane %v58, 2
    %v60 = vadd.f32 %v58, %v59
    %v61 = vrot.slane %v60, 1
    %v62 = vadd.f32 %v60, %v61
    %v63 = vsub.f32 %v62, %v46
    %v64 = vmul.f32 %v63, 1.442695
    %v65 = vpow.pop %v64
    %v66 = vsub.f32 1.0, %v65
    %v67 = vmul.f32 %v66, %v66
    %v68 = vsub.f32 0.0, %v67
    %v69 = vmul.f32 %v68, %v63
    %s70 = smul.u32 0, 128
    %v71 = vlaneseq
    %v72 = vand.u32 %v71, 127
    %v73 = vstv %s70
    %v74 = vadd.s32 %v73, %v72
    %s75 = sld [smem:[#allocation3]]
    %v76 = vstv %s75
    %vm77 = vcmp.lt.s32.totalorder %v74, %v76
    %v78 = vsel %vm77, %v69, 0.0
    %vm79 = vcmask 1040384
    %v80 = vsel %vm79, %v78, 0.0
    %81 = vadd.xlane.f32.xlu0 %v80
    %v82 = vpop.xlane.xlu0 %81
    %v83 = vrot.slane %v82, 4
    %v84 = vadd.f32 %v82, %v83
    %v85 = vrot.slane %v84, 2
    %v86 = vadd.f32 %v84, %v85
    %v87 = vrot.slane %v86, 1
    %v88 = vadd.f32 %v86, %v87
    %s89 = vtos %v88
    %v90 = vstv %s89
    %91 = vst [vmem:[%s3] sm:$0x1] %v90
    // Predicated region
    $region14: #{focal_loss_cn.1} parent=1 // pred_check
      _
    $region15: #{focal_loss_cn.1} parent=1 // pred_check_branch
      %93 = sbr.rel (0) target = $region17
    $region16: #{focal_loss_cn.1} parent=1 // pred_region
      _
    $region17: #{focal_loss_cn.1} parent=1 // pred_fallthru
      _
    // Predicated region
    $region18: #{focal_loss_cn.1} parent=1 // pred_check
      _
    $region19: #{focal_loss_cn.1} parent=1 // pred_check_branch
      %95 = sbr.rel (0) target = $region21
    $region20: #{focal_loss_cn.1} parent=1 // pred_region
      _
    $region21: #{focal_loss_cn.1} parent=1 // pred_fallthru
      _
    %96 = vsyncpa [#allocation5], 1

</llo_original>
